<compile_context>
chip_gen: v6e
topology: v6e:2x2x1
jax: 0.10.0
libtpu: 0.0.40
codegen_flags: <defaults>
</compile_context>

<pallas_src>
import math

import jax
import jax.numpy as jnp
from jax import lax
from jax.experimental import pallas as pl
from jax.experimental.pallas import tpu as pltpu


def _round_up(x, m):
    return ((x + m - 1) // m) * m


def _vmem_capacity_bytes(default=128 * 1024 * 1024):
    try:
        info = pltpu.get_tpu_info()
        cap = getattr(info, "vmem_capacity_bytes", None)
        if cap:
            return int(cap)
    except Exception:
        pass
    return default


def _build_denoise_kernel(n_rest_layers, tanh_flags, norm, dropout_mode,
                          inv_keep, thresh_i32, compute_dtype):
    """Builds the Pallas kernel closed over the static module configuration.

    dropout_mode: None | "prng" (in-kernel TPU PRNG) | "host_mask" (uint8 mask input)
                  | "zero" (p >= 1).
    """

    def kernel(seed_ref, *refs):
        it = iter(refs)
        t_ref = next(it)                      # (TB, 1)      f32 timesteps
        freqs_ref = next(it)                  # (1, half)    f32
        x_ref = next(it)                      # (TB, d0)     f32
        mask_ref = next(it) if dropout_mode == "host_mask" else None  # (TB, d0) u8
        emb_wc_ref = next(it)                 # (half, E)    compute_dtype
        emb_ws_ref = next(it)                 # (half, E)    compute_dtype
        emb_b_ref = next(it)                  # (1, E)       f32
        wx0_ref = next(it)                    # (d0, H1)     compute_dtype
        we0_ref = next(it)                    # (E,  H1)     compute_dtype
        b0_ref = next(it)                     # (1, H1)      f32
        rest = [(next(it), next(it)) for _ in range(n_rest_layers)]
        o_ref = next(it)

        # --- sinusoidal time embedding + emb Linear (split matmul, no lane concat) ---
        temp = t_ref[...] * freqs_ref[...]                     # (TB, half)
        cos_p = jnp.cos(temp).astype(compute_dtype)
        sin_p = jnp.sin(temp).astype(compute_dtype)
        emb = (jnp.dot(cos_p, emb_wc_ref[...], preferred_element_type=jnp.float32)
               + jnp.dot(sin_p, emb_ws_ref[...], preferred_element_type=jnp.float32)
               + emb_b_ref[...])                               # (TB, E) f32

        x = x_ref[...]
        if norm:
            # F.normalize(x, p=2, dim=-1) via rsqrt (EUP) + multiply.
            ss = jnp.sum(x * x, axis=-1, keepdims=True)
            x = x * lax.rsqrt(jnp.maximum(ss, 1e-24))

        if dropout_mode == "prng":
            # In-kernel dropout: HW PRNG, per-tile seed, signed-int32 threshold compare.
            pltpu.prng_seed(seed_ref[0] + pl.program_id(0))
            bits = pltpu.bitcast(pltpu.prng_random_bits(x.shape), jnp.int32)
            keep = (bits < jnp.int32(thresh_i32)).astype(jnp.float32)
            x = x * (keep * jnp.float32(inv_keep))
        elif dropout_mode == "host_mask":
            # Fallback (non-TPU backends): uint8 0/1 mask streamed in, scaled here.
            x = x * (mask_ref[...].astype(jnp.float32) * jnp.float32(inv_keep))
        elif dropout_mode == "zero":
            x = jnp.zeros_like(x)

        # --- first trunk layer on concat([x, emb]) rewritten as two matmuls ---
        h = (jnp.dot(x.astype(compute_dtype), wx0_ref[...],
                     preferred_element_type=jnp.float32)
             + jnp.dot(emb.astype(compute_dtype), we0_ref[...],
                       preferred_element_type=jnp.float32)
             + b0_ref[...])
        if tanh_flags[0]:
            h = jnp.tanh(h)

        # --- remaining in_layers / out_layers (statically unrolled) ---
        for li, (w_ref, b_ref) in enumerate(rest):
            h = (jnp.dot(h.astype(compute_dtype), w_ref[...],
                         preferred_element_type=jnp.float32) + b_ref[...])
            if tanh_flags[li + 1]:
                h = jnp.tanh(h)

        o_ref[...] = h.astype(o_ref.dtype)

    return kernel


def init_denoise_params(key, in_dims, out_dims, emb_size):
    """Deterministic parameter init mirroring Denoise.init_weights shapes/stds.

    Weights stored (in_features, out_features); biases (1, out_features)."""
    params = {}
    keys = jax.random.split(key, 2 + 2 * len(in_dims) + 2 * len(out_dims))
    ki = iter(range(len(keys)))

    std = math.sqrt(2.0 / (emb_size + emb_size))
    params["emb_w"] = std * jax.random.normal(keys[next(ki)], (emb_size, emb_size), jnp.float32)
    params["emb_b"] = 0.001 * jax.random.normal(keys[next(ki)], (1, emb_size), jnp.float32)

    in_dims_temp = [in_dims[0] + emb_size] + list(in_dims[1:])
    params["in_layers"] = []
    for d_in, d_out in zip(in_dims_temp[:-1], in_dims_temp[1:]):
        std = math.sqrt(2.0 / (d_in + d_out))
        w = std * jax.random.normal(keys[next(ki)], (d_in, d_out), jnp.float32)
        b = 0.001 * jax.random.normal(keys[next(ki)], (1, d_out), jnp.float32)
        params["in_layers"].append((w, b))

    params["out_layers"] = []
    for d_in, d_out in zip(out_dims[:-1], out_dims[1:]):
        std = math.sqrt(2.0 / (d_in + d_out))
        w = std * jax.random.normal(keys[next(ki)], (d_in, d_out), jnp.float32)
        b = 0.001 * jax.random.normal(keys[next(ki)], (1, d_out), jnp.float32)
        params["out_layers"].append((w, b))

    return params


def denoise_forward(params, x, timesteps, *, norm=False, mess_dropout=True, drop_p=0.5,
                    dropout_key=None, compute_dtype=jnp.bfloat16):
    """Forward pass of Denoise as a single batch-tiled Pallas kernel."""
    B, d0 = x.shape
    emb_size = params["emb_w"].shape[0]
    half = emb_size // 2

    on_tpu = jax.default_backend() == "tpu"

    # ---------- host-side layout plumbing (no compute hoisting) ----------
    freqs = jnp.exp(-math.log(10000.0)
                    * jnp.arange(half, dtype=jnp.float32) / float(half)).reshape(1, half)
    t = timesteps.astype(jnp.float32).reshape(B, 1)
    x = x.astype(jnp.float32)

    # Unified trunk: in_layers (tanh after each) then out_layers (tanh except last).
    trunk = list(params["in_layers"]) + list(params["out_layers"])
    n_in, n_out = len(params["in_layers"]), len(params["out_layers"])
    tanh_flags = tuple([True] * n_in + ([True] * (n_out - 1) + [False] if n_out else []))

    # Output padding: only pad to a lane multiple of 128 when the pad fraction is
    # small; otherwise a masked narrow store is cheaper than extra HBM bytes + slice.
    out_dim = trunk[-1][0].shape[1]
    out_pad = _round_up(out_dim, 128)
    if out_pad != out_dim and (out_pad - out_dim) > 0.10 * out_pad:
        out_pad = out_dim
    if out_pad != out_dim:
        w_last, b_last = trunk[-1]
        w_last = jnp.pad(w_last, ((0, 0), (0, out_pad - out_dim)))
        b_last = jnp.pad(b_last, ((0, 0), (0, out_pad - out_dim)))
        trunk[-1] = (w_last, b_last)

    # Split first trunk layer (consumes concat([x, emb])) into x / emb halves.
    w0, b0 = trunk[0]
    wx0, we0 = w0[:d0], w0[d0:]

    # Split emb_layer weight into cos / sin row blocks (odd-emb zero pad row drops out).
    emb_w, emb_b = params["emb_w"], params["emb_b"]
    emb_wc, emb_ws = emb_w[:half], emb_w[half:2 * half]

    cast = lambda w: w.astype(compute_dtype)

    # ---------- dropout configuration ----------
    dropout_mode = None
    inv_keep = 1.0
    thresh_i32 = 0
    if mess_dropout:
        keep_prob = 1.0 - float(drop_p)
        if keep_prob >= 1.0:
            dropout_mode = None
        elif keep_prob <= 0.0:
            dropout_mode = "zero"
        else:
            dropout_mode = "prng" if on_tpu else "host_mask"
            inv_keep = 1.0 / keep_prob
            thresh_i32 = int(round(keep_prob * 2.0 ** 32)) - 2 ** 31
            thresh_i32 = max(min(thresh_i32, 2 ** 31 - 1), -(2 ** 31))

    # ---------- generation-aware tiling / VMEM limit ----------
    vmem_cap = _vmem_capacity_bytes() if on_tpu else 128 * 1024 * 1024
    small_vmem = vmem_cap <= 64 * 1024 * 1024           # e.g. v7x
    vmem_limit = 48 * 1024 * 1024 if small_vmem else 96 * 1024 * 1024
    tile_cap = 1024 if small_vmem else 2048

    if B <= 16:
        tb = B                                           # block dim == full dim is legal
    else:
        # Ensure >= ~4 grid steps so DMA/compute pipelining and megacore sharding engage.
        tb_target = -(-B // 4)
        tb = max(8, min(tile_cap, _round_up(tb_target, 8)))
    grid = (pl.cdiv(B, tb),)

    row_spec = lambda ncols: pl.BlockSpec((tb, ncols), lambda i, *_: (i, 0))
    const_spec = lambda arr: pl.BlockSpec(arr.shape, lambda i, *_: (0, 0))

    inputs = [t, freqs, x]
    in_specs = [row_spec(1), const_spec(freqs), row_spec(d0)]

    # Seed scalar (SMEM via scalar prefetch). Only used when dropout_mode == "prng".
    if dropout_mode == "prng":
        key = dropout_key if dropout_key is not None else jax.random.PRNGKey(0)
        seed = jax.random.randint(key, (1,), 0, jnp.iinfo(jnp.int32).max, dtype=jnp.int32)
    else:
        seed = jnp.zeros((1,), jnp.int32)

    if dropout_mode == "host_mask":
        key = dropout_key if dropout_key is not None else jax.random.PRNGKey(0)
        mask = jax.random.bernoulli(key, 1.0 - float(drop_p), (B, d0)).astype(jnp.uint8)
        inputs.append(mask)
        in_specs.append(row_spec(d0))

    weights = [cast(emb_wc), cast(emb_ws), emb_b, cast(wx0), cast(we0), b0]
    for w, b in trunk[1:]:
        weights += [cast(w), b]
    inputs += weights
    in_specs += [const_spec(a) for a in weights]

    kernel = _build_denoise_kernel(
        n_rest_layers=len(trunk) - 1, tanh_flags=tanh_flags, norm=norm,
        dropout_mode=dropout_mode, inv_keep=inv_keep, thresh_i32=thresh_i32,
        compute_dtype=compute_dtype)

    compiler_params = None
    if on_tpu:
        compiler_params = pltpu.CompilerParams(
            dimension_semantics=("parallel",),
            vmem_limit_bytes=vmem_limit)

    out = pl.pallas_call(
        kernel,
        out_shape=jax.ShapeDtypeStruct((B, out_pad), jnp.float32),
        grid_spec=pltpu.PrefetchScalarGridSpec(
            num_scalar_prefetch=1,
            grid=grid,
            in_specs=in_specs,
            out_specs=pl.BlockSpec((tb, out_pad), lambda i, *_: (i, 0)),
        ),
        compiler_params=compiler_params,
    )(seed, *inputs)

    return out[:, :out_dim] if out_pad != out_dim else out


if __name__ == "__main__":
    # Small shapes consistent with the module: a denoising MLP over 64-dim items.
    B = 8
    in_dims = [64, 32]       # -> one in_layer: Linear(64 + emb, 32)
    out_dims = [32, 64]      # -> one out_layer: Linear(32, 64)
    emb_size = 16

    key = jax.random.PRNGKey(0)
    k_param, k_x, k_t, k_drop = jax.random.split(key, 4)

    params = init_denoise_params(k_param, in_dims, out_dims, emb_size)
    x = jax.random.normal(k_x, (B, in_dims[0]), jnp.float32)
    timesteps = jax.random.randint(k_t, (B,), 0, 1000, jnp.int32)

    # Training-style call: dropout on (in-kernel PRNG on TPU), no normalize.
    out = denoise_forward(params, x, timesteps, norm=False, mess_dropout=True,
                          drop_p=0.5, dropout_key=k_drop)
    out = jax.block_until_ready(out)
    assert out.shape == (B, out_dims[-1]) and out.dtype == jnp.float32
    assert bool(jnp.all(jnp.isfinite(out)))

    # Eval-style call: normalize on, dropout off (exercises the other kernel paths).
    out2 = denoise_forward(params, x, timesteps, norm=True, mess_dropout=False)
    out2 = jax.block_until_ready(out2)
    assert out2.shape == (B, out_dims[-1])
    assert bool(jnp.all(jnp.isfinite(out2)))

    print("KERNEL_OK")
</pallas_src>

<mosaic_0001>
module attributes {stable_mosaic.version = 11 : i64} {
  func.func @kernel(%arg0: i32, %arg1: memref<1xi32, #tpu.memory_space<smem>>, %arg2: memref<8x1xf32, #tpu.memory_space<vmem>>, %arg3: memref<1x8xf32, #tpu.memory_space<vmem>>, %arg4: memref<8x64xf32, #tpu.memory_space<vmem>>, %arg5: memref<8x64xi8, #tpu.memory_space<vmem>>, %arg6: memref<8x16xbf16, #tpu.memory_space<vmem>>, %arg7: memref<8x16xbf16, #tpu.memory_space<vmem>>, %arg8: memref<1x16xf32, #tpu.memory_space<vmem>>, %arg9: memref<64x32xbf16, #tpu.memory_space<vmem>>, %arg10: memref<16x32xbf16, #tpu.memory_space<vmem>>, %arg11: memref<1x32xf32, #tpu.memory_space<vmem>>, %arg12: memref<32x64xbf16, #tpu.memory_space<vmem>>, %arg13: memref<1x64xf32, #tpu.memory_space<vmem>>, %arg14: memref<8x64xf32, #tpu.memory_space<vmem>>) attributes {dimension_semantics = [#tpu.dimension_semantics<arbitrary>], iteration_bounds = array<i64: 1>, scalar_prefetch = 1 : i64, scratch_operands = 0 : i64, tpu.core_type = #tpu.core_type<tc>, window_params = [{transform_indices = @transform_0, window_bounds = array<i64: 8, 1>}, {pipeline_mode = #tpu.pipeline_mode<synchronous>, transform_indices = @transform_1, window_bounds = array<i64: 1, 8>}, {transform_indices = @transform_2, window_bounds = array<i64: 8, 64>}, {transform_indices = @transform_3, window_bounds = array<i64: 8, 64>}, {pipeline_mode = #tpu.pipeline_mode<synchronous>, transform_indices = @transform_4, window_bounds = array<i64: 8, 16>}, {pipeline_mode = #tpu.pipeline_mode<synchronous>, transform_indices = @transform_5, window_bounds = array<i64: 8, 16>}, {pipeline_mode = #tpu.pipeline_mode<synchronous>, transform_indices = @transform_6, window_bounds = array<i64: 1, 16>}, {pipeline_mode = #tpu.pipeline_mode<synchronous>, transform_indices = @transform_7, window_bounds = array<i64: 64, 32>}, {pipeline_mode = #tpu.pipeline_mode<synchronous>, transform_indices = @transform_8, window_bounds = array<i64: 16, 32>}, {pipeline_mode = #tpu.pipeline_mode<synchronous>, transform_indices = @transform_9, window_bounds = array<i64: 1, 32>}, {pipeline_mode = #tpu.pipeline_mode<synchronous>, transform_indices = @transform_10, window_bounds = array<i64: 32, 64>}, {pipeline_mode = #tpu.pipeline_mode<synchronous>, transform_indices = @transform_11, window_bounds = array<i64: 1, 64>}, {transform_indices = @transform_12, window_bounds = array<i64: 8, 64>}]} {
    %c0 = arith.constant 0 : index
    %c0_0 = arith.constant 0 : index
    %0 = vector.load %arg2[%c0, %c0_0] : memref<8x1xf32, #tpu.memory_space<vmem>>, vector<8x1xf32>
    %c0_1 = arith.constant 0 : index
    %c0_2 = arith.constant 0 : index
    %1 = vector.load %arg3[%c0_1, %c0_2] : memref<1x8xf32, #tpu.memory_space<vmem>>, vector<1x8xf32>
    %2 = vector.broadcast %0 : vector<8x1xf32> to vector<8x8xf32>
    %3 = vector.broadcast %1 : vector<1x8xf32> to vector<8x8xf32>
    %4 = arith.mulf %2, %3 : vector<8x8xf32>
    %5 = math.cos %4 : vector<8x8xf32>
    %6 = arith.truncf %5 : vector<8x8xf32> to vector<8x8xbf16>
    %7 = math.sin %4 : vector<8x8xf32>
    %8 = arith.truncf %7 : vector<8x8xf32> to vector<8x8xbf16>
    %c0_3 = arith.constant 0 : index
    %c0_4 = arith.constant 0 : index
    %9 = vector.load %arg6[%c0_3, %c0_4] : memref<8x16xbf16, #tpu.memory_space<vmem>>, vector<8x16xbf16>
    %cst = arith.constant dense<0.000000e+00> : vector<8x16xf32>
    %10 = tpu.matmul %6, %9, %cst {dimension_numbers = #tpu.dot_dimension_numbers<[1], [0], [0], [1], [0, 0, 1, 1], [], []>} : vector<8x8xbf16>, vector<8x16xbf16>, vector<8x16xf32> -> vector<8x16xf32>
    %c0_5 = arith.constant 0 : index
    %c0_6 = arith.constant 0 : index
    %11 = vector.load %arg7[%c0_5, %c0_6] : memref<8x16xbf16, #tpu.memory_space<vmem>>, vector<8x16xbf16>
    %cst_7 = arith.constant dense<0.000000e+00> : vector<8x16xf32>
    %12 = tpu.matmul %8, %11, %cst_7 {dimension_numbers = #tpu.dot_dimension_numbers<[1], [0], [0], [1], [0, 0, 1, 1], [], []>} : vector<8x8xbf16>, vector<8x16xbf16>, vector<8x16xf32> -> vector<8x16xf32>
    %13 = arith.addf %10, %12 : vector<8x16xf32>
    %c0_8 = arith.constant 0 : index
    %c0_9 = arith.constant 0 : index
    %14 = vector.load %arg8[%c0_8, %c0_9] : memref<1x16xf32, #tpu.memory_space<vmem>>, vector<1x16xf32>
    %15 = vector.broadcast %14 : vector<1x16xf32> to vector<8x16xf32>
    %16 = arith.addf %13, %15 : vector<8x16xf32>
    %c0_10 = arith.constant 0 : index
    %c0_11 = arith.constant 0 : index
    %17 = vector.load %arg4[%c0_10, %c0_11] : memref<8x64xf32, #tpu.memory_space<vmem>>, vector<8x64xf32>
    %c0_12 = arith.constant 0 : index
    %c0_13 = arith.constant 0 : index
    %18 = vector.load %arg5[%c0_12, %c0_13] : memref<8x64xi8, #tpu.memory_space<vmem>>, vector<8x64xi8>
    %19 = arith.uitofp %18 : vector<8x64xi8> to vector<8x64xf32>
    %cst_14 = arith.constant 2.000000e+00 : f32
    %20 = vector.broadcast %cst_14 : f32 to vector<8x64xf32>
    %21 = arith.mulf %19, %20 : vector<8x64xf32>
    %22 = arith.mulf %17, %21 : vector<8x64xf32>
    %23 = arith.truncf %22 : vector<8x64xf32> to vector<8x64xbf16>
    %c0_15 = arith.constant 0 : index
    %c0_16 = arith.constant 0 : index
    %24 = vector.load %arg9[%c0_15, %c0_16] : memref<64x32xbf16, #tpu.memory_space<vmem>>, vector<64x32xbf16>
    %cst_17 = arith.constant dense<0.000000e+00> : vector<8x32xf32>
    %25 = tpu.matmul %23, %24, %cst_17 {dimension_numbers = #tpu.dot_dimension_numbers<[1], [0], [0], [1], [0, 0, 1, 1], [], []>} : vector<8x64xbf16>, vector<64x32xbf16>, vector<8x32xf32> -> vector<8x32xf32>
    %26 = arith.truncf %16 : vector<8x16xf32> to vector<8x16xbf16>
    %c0_18 = arith.constant 0 : index
    %c0_19 = arith.constant 0 : index
    %27 = vector.load %arg10[%c0_18, %c0_19] : memref<16x32xbf16, #tpu.memory_space<vmem>>, vector<16x32xbf16>
    %cst_20 = arith.constant dense<0.000000e+00> : vector<8x32xf32>
    %28 = tpu.matmul %26, %27, %cst_20 {dimension_numbers = #tpu.dot_dimension_numbers<[1], [0], [0], [1], [0, 0, 1, 1], [], []>} : vector<8x16xbf16>, vector<16x32xbf16>, vector<8x32xf32> -> vector<8x32xf32>
    %29 = arith.addf %25, %28 : vector<8x32xf32>
    %c0_21 = arith.constant 0 : index
    %c0_22 = arith.constant 0 : index
    %30 = vector.load %arg11[%c0_21, %c0_22] : memref<1x32xf32, #tpu.memory_space<vmem>>, vector<1x32xf32>
    %31 = vector.broadcast %30 : vector<1x32xf32> to vector<8x32xf32>
    %32 = arith.addf %29, %31 : vector<8x32xf32>
    %33 = math.tanh %32 : vector<8x32xf32>
    %34 = arith.truncf %33 : vector<8x32xf32> to vector<8x32xbf16>
    %c0_23 = arith.constant 0 : index
    %c0_24 = arith.constant 0 : index
    %35 = vector.load %arg12[%c0_23, %c0_24] : memref<32x64xbf16, #tpu.memory_space<vmem>>, vector<32x64xbf16>
    %cst_25 = arith.constant dense<0.000000e+00> : vector<8x64xf32>
    %36 = tpu.matmul %34, %35, %cst_25 {dimension_numbers = #tpu.dot_dimension_numbers<[1], [0], [0], [1], [0, 0, 1, 1], [], []>} : vector<8x32xbf16>, vector<32x64xbf16>, vector<8x64xf32> -> vector<8x64xf32>
    %c0_26 = arith.constant 0 : index
    %c0_27 = arith.constant 0 : index
    %37 = vector.load %arg13[%c0_26, %c0_27] : memref<1x64xf32, #tpu.memory_space<vmem>>, vector<1x64xf32>
    %38 = vector.broadcast %37 : vector<1x64xf32> to vector<8x64xf32>
    %39 = arith.addf %36, %38 : vector<8x64xf32>
    %c0_28 = arith.constant 0 : index
    %c0_29 = arith.constant 0 : index
    %40 = vector.load %arg14[%c0_28, %c0_29] : memref<8x64xf32, #tpu.memory_space<vmem>>, vector<8x64xf32>
    tpu.vector_store %arg14[%c0_28, %c0_29], %39 {strides = array<i32>} : memref<8x64xf32, #tpu.memory_space<vmem>>, vector<8x64xf32>,
    return
  }
  func.func @transform_0(%arg0: i32, %arg1: memref<1xi32, #tpu.memory_space<smem>>) -> (i32, i32) {
    %c0_i32 = arith.constant 0 : i32
    %c0_i32_0 = arith.constant 0 : i32
    return %arg0, %c0_i32 : i32, i32
  }
  func.func @transform_1(%arg0: i32, %arg1: memref<1xi32, #tpu.memory_space<smem>>) -> (i32, i32) {
    %c0_i32 = arith.constant 0 : i32
    %c0_i32_0 = arith.constant 0 : i32
    %c0_i32_1 = arith.constant 0 : i32
    return %c0_i32, %c0_i32_0 : i32, i32
  }
  func.func @transform_2(%arg0: i32, %arg1: memref<1xi32, #tpu.memory_space<smem>>) -> (i32, i32) {
    %c0_i32 = arith.constant 0 : i32
    %c0_i32_0 = arith.constant 0 : i32
    return %arg0, %c0_i32 : i32, i32
  }
  func.func @transform_3(%arg0: i32, %arg1: memref<1xi32, #tpu.memory_space<smem>>) -> (i32, i32) {
    %c0_i32 = arith.constant 0 : i32
    %c0_i32_0 = arith.constant 0 : i32
    return %arg0, %c0_i32 : i32, i32
  }
  func.func @transform_4(%arg0: i32, %arg1: memref<1xi32, #tpu.memory_space<smem>>) -> (i32, i32) {
    %c0_i32 = arith.constant 0 : i32
    %c0_i32_0 = arith.constant 0 : i32
    %c0_i32_1 = arith.constant 0 : i32
    return %c0_i32, %c0_i32_0 : i32, i32
  }
  func.func @transform_5(%arg0: i32, %arg1: memref<1xi32, #tpu.memory_space<smem>>) -> (i32, i32) {
    %c0_i32 = arith.constant 0 : i32
    %c0_i32_0 = arith.constant 0 : i32
    %c0_i32_1 = arith.constant 0 : i32
    return %c0_i32, %c0_i32_0 : i32, i32
  }
  func.func @transform_6(%arg0: i32, %arg1: memref<1xi32, #tpu.memory_space<smem>>) -> (i32, i32) {
    %c0_i32 = arith.constant 0 : i32
    %c0_i32_0 = arith.constant 0 : i32
    %c0_i32_1 = arith.constant 0 : i32
    return %c0_i32, %c0_i32_0 : i32, i32
  }
  func.func @transform_7(%arg0: i32, %arg1: memref<1xi32, #tpu.memory_space<smem>>) -> (i32, i32) {
    %c0_i32 = arith.constant 0 : i32
    %c0_i32_0 = arith.constant 0 : i32
    %c0_i32_1 = arith.constant 0 : i32
    return %c0_i32, %c0_i32_0 : i32, i32
  }
  func.func @transform_8(%arg0: i32, %arg1: memref<1xi32, #tpu.memory_space<smem>>) -> (i32, i32) {
    %c0_i32 = arith.constant 0 : i32
    %c0_i32_0 = arith.constant 0 : i32
    %c0_i32_1 = arith.constant 0 : i32
    return %c0_i32, %c0_i32_0 : i32, i32
  }
  func.func @transform_9(%arg0: i32, %arg1: memref<1xi32, #tpu.memory_space<smem>>) -> (i32, i32) {
    %c0_i32 = arith.constant 0 : i32
    %c0_i32_0 = arith.constant 0 : i32
    %c0_i32_1 = arith.constant 0 : i32
    return %c0_i32, %c0_i32_0 : i32, i32
  }
  func.func @transform_10(%arg0: i32, %arg1: memref<1xi32, #tpu.memory_space<smem>>) -> (i32, i32) {
    %c0_i32 = arith.constant 0 : i32
    %c0_i32_0 = arith.constant 0 : i32
    %c0_i32_1 = arith.constant 0 : i32
    return %c0_i32, %c0_i32_0 : i32, i32
  }
  func.func @transform_11(%arg0: i32, %arg1: memref<1xi32, #tpu.memory_space<smem>>) -> (i32, i32) {
    %c0_i32 = arith.constant 0 : i32
    %c0_i32_0 = arith.constant 0 : i32
    %c0_i32_1 = arith.constant 0 : i32
    return %c0_i32, %c0_i32_0 : i32, i32
  }
  func.func @transform_12(%arg0: i32, %arg1: memref<1xi32, #tpu.memory_space<smem>>) -> (i32, i32) {
    %c0_i32 = arith.constant 0 : i32
    %c0_i32_0 = arith.constant 0 : i32
    return %arg0, %c0_i32 : i32, i32
  }
}

</mosaic_0001>

<llo_original>
// kernel: tpu_custom_call.1
$region0: #{tpu_custom_call.1}
  #allocation0 [shape = 'u32[]', space=smem, size = 0x4, offset = 0x4, fixed_abs, tag = 'smem constant byte address 0x4 - core index']
  #allocation1 [shape = 'u32[144,128]{1,0:T(1,128)}', space=vmem, size = 0x12000, scoped, tag = 'internal scratch']
  #allocation2 [shape = 's32[1]{0}', space=sflag, size = 0x4, scoped, tag = 'scoped memory for tpu_custom_call.1']
  #allocation3 [shape = 's32[1]{0:T(128)S(6)}', space=smem, size = 0x200, scoped, tag = 'prefetched SMEM operand 0']
  %s0 = inlined_call_operand.<no memory space> [shape: s32[1], index: 0, kind: input, shape index: {}]
  %s1 = inlined_call_operand.vmem [shape: f32[8,1], index: 1, kind: input, shape index: {}]
  %s2 = inlined_call_operand.vmem [shape: f32[1,8], index: 2, kind: input, shape index: {}]
  %s3 = inlined_call_operand.vmem [shape: f32[8,64], index: 3, kind: input, shape index: {}]
  %s4 = inlined_call_operand.vmem [shape: u8[8,64], index: 4, kind: input, shape index: {}]
  %s5 = inlined_call_operand.vmem [shape: bf16[8,16], index: 5, kind: input, shape index: {}]
  %s6 = inlined_call_operand.vmem [shape: bf16[8,16], index: 6, kind: input, shape index: {}]
  %s7 = inlined_call_operand.vmem [shape: f32[1,16], index: 7, kind: input, shape index: {}]
  %s8 = inlined_call_operand.vmem [shape: bf16[64,32], index: 8, kind: input, shape index: {}]
  %s9 = inlined_call_operand.vmem [shape: bf16[16,32], index: 9, kind: input, shape index: {}]
  %s10 = inlined_call_operand.vmem [shape: f32[1,32], index: 10, kind: input, shape index: {}]
  %s11 = inlined_call_operand.vmem [shape: bf16[32,64], index: 11, kind: input, shape index: {}]
  %s12 = inlined_call_operand.vmem [shape: f32[1,64], index: 12, kind: input, shape index: {}]
  %s13 = inlined_call_operand.hbm [shape: f32[8,64], index: 13, kind: output, shape index: {}]
  %s14 = sld [smem:[#allocation0]]
  $region58: #{tpu_custom_call.1} parent=0
    _
  %s16 = ssub.s32 1, %s14
  %s17 = scalar_select 0, %s16, %s14
  %18 = sst [smem:[#allocation3]] %s0
  $region1: #{tpu_custom_call.1} parent=0
    #allocation4 [shape = 'u8[4096]{0}', space=vmem, size = 0x1000, scoped, tag = 'output window, operand 0, single buffered']
    #allocation5 [shape = 's32[1]{0}', space=sflag, size = 0x4, scoped, tag = 'scoped memory for tpu_custom_call.1']
    %19 = vsyncpa [#allocation5], 0
    // Predicated region
    $region2: #{tpu_custom_call.1} parent=1 // pred_check
      _
    $region3: #{tpu_custom_call.1} parent=1 // pred_check_branch
      %21 = sbr.rel (0) target = $region5
    $region4: #{tpu_custom_call.1} parent=1 // pred_region
      _
    $region5: #{tpu_custom_call.1} parent=1 // pred_fallthru
      _
    // Predicated region
    $region6: #{tpu_custom_call.1} parent=1 // pred_check
      _
    $region7: #{tpu_custom_call.1} parent=1 // pred_check_branch
      %23 = sbr.rel (0) target = $region9
    $region8: #{tpu_custom_call.1} parent=1 // pred_region
      _
    $region9: #{tpu_custom_call.1} parent=1 // pred_fallthru
      _
    // Predicated region
    $region10: #{tpu_custom_call.1} parent=1 // pred_check
      _
    $region11: #{tpu_custom_call.1} parent=1 // pred_check_branch
      %25 = sbr.rel (0) target = $region13
    $region12: #{tpu_custom_call.1} parent=1 // pred_region
      _
    $region13: #{tpu_custom_call.1} parent=1 // pred_fallthru
      _
    // Predicated region
    $region14: #{tpu_custom_call.1} parent=1 // pred_check
      _
    $region15: #{tpu_custom_call.1} parent=1 // pred_check_branch
      %27 = sbr.rel (0) target = $region17
    $region16: #{tpu_custom_call.1} parent=1 // pred_region
      _
    $region17: #{tpu_custom_call.1} parent=1 // pred_fallthru
      _
    // Predicated region
    $region18: #{tpu_custom_call.1} parent=1 // pred_check
      _
    $region19: #{tpu_custom_call.1} parent=1 // pred_check_branch
      %29 = sbr.rel (0) target = $region21
    $region20: #{tpu_custom_call.1} parent=1 // pred_region
      _
    $region21: #{tpu_custom_call.1} parent=1 // pred_fallthru
      _
    // Predicated region
    $region22: #{tpu_custom_call.1} parent=1 // pred_check
      _
    $region23: #{tpu_custom_call.1} parent=1 // pred_check_branch
      %31 = sbr.rel (0) target = $region25
    $region24: #{tpu_custom_call.1} parent=1 // pred_region
      _
    $region25: #{tpu_custom_call.1} parent=1 // pred_fallthru
      _
    // Predicated region
    $region26: #{tpu_custom_call.1} parent=1 // pred_check
      _
    $region27: #{tpu_custom_call.1} parent=1 // pred_check_branch
      %33 = sbr.rel (0) target = $region29
    $region28: #{tpu_custom_call.1} parent=1 // pred_region
      _
    $region29: #{tpu_custom_call.1} parent=1 // pred_fallthru
      _
    // Predicated region
    $region30: #{tpu_custom_call.1} parent=1 // pred_check
      _
    $region31: #{tpu_custom_call.1} parent=1 // pred_check_branch
      %35 = sbr.rel (0) target = $region33
    $region32: #{tpu_custom_call.1} parent=1 // pred_region
      _
    $region33: #{tpu_custom_call.1} parent=1 // pred_fallthru
      _
    // Predicated region
    $region34: #{tpu_custom_call.1} parent=1 // pred_check
      _
    $region35: #{tpu_custom_call.1} parent=1 // pred_check_branch
      %37 = sbr.rel (0) target = $region37
    $region36: #{tpu_custom_call.1} parent=1 // pred_region
      _
    $region37: #{tpu_custom_call.1} parent=1 // pred_fallthru
      _
    // Predicated region
    $region38: #{tpu_custom_call.1} parent=1 // pred_check
      _
    $region39: #{tpu_custom_call.1} parent=1 // pred_check_branch
      %39 = sbr.rel (0) target = $region41
    $region40: #{tpu_custom_call.1} parent=1 // pred_region
      _
    $region41: #{tpu_custom_call.1} parent=1 // pred_fallthru
      _
    // Predicated region
    $region42: #{tpu_custom_call.1} parent=1 // pred_check
      _
    $region43: #{tpu_custom_call.1} parent=1 // pred_check_branch
      %41 = sbr.rel (0) target = $region45
    $region44: #{tpu_custom_call.1} parent=1 // pred_region
      _
    $region45: #{tpu_custom_call.1} parent=1 // pred_fallthru
      _
    // Predicated region
    $region46: #{tpu_custom_call.1} parent=1 // pred_check
      _
    $region47: #{tpu_custom_call.1} parent=1 // pred_check_branch
      %43 = sbr.rel (0) target = $region49
    $region48: #{tpu_custom_call.1} parent=1 // pred_region
      _
    $region49: #{tpu_custom_call.1} parent=1 // pred_fallthru
      _
    %v45 = vld [vmem:[%s1] sm:$0xff]
    %v46 = vld [vmem:[%s2] sm:$0x1]
    %48 = vset.pattern.permute.xlu0 0
    %49 = vperm.xlu0 %48, %v45
    %v50 = vpop.permute.xlu0 %49
    %v53 = vlaneseq
    %v54 = vshrl.u32 %v53, 7
    %v55 = vsub.s32 0, %v54
    %v56 = vrot.slane %v46, %v55
    %v58 = vmul.f32 %v50, %v56
    %v59 = vand.u32 2147483647, %v58
    %vm60 = vcmp.le.f32.partialorder %v59, 0.7853982
    %vm61 = vcmp.lt.s32.totalorder %v58, 0
    %v62 = vand.u32 %v58, 2139095040
    %v63 = vshrl.u32 %v62, 23
    %v64 = vsub.s32 %v63, 127
    %v65 = vand.u32 2147483647, %v58
    %v66 = vand.u32 %v65, 8388607
    %v67 = vor.u32 %v66, 8388608
    %v68 = vsub.s32 0, %v67
    %v69 = vadd.s32 %v64, 1
    %vm70 = vcmp.gt.s32.totalorder %v69, 0
    %v71 = vsel %vm70, %v69, 0
    %v72 = vshrl.u32 %v71, 5
    %v73 = vand.u32 %v71, 31
    %v74 = vsub.s32 32, %v73
    %v75 = vshrl.u32 683565275, %v74
    %v76 = vshll.u32 683565275, %v73
    %v77 = vshrl.u32 2475754826, %v74
    %v78 = vor.u32 %v76, %v77
    %v79 = vshll.u32 2475754826, %v73
    %v80 = vshrl.u32 2131351028, %v74
    %v81 = vor.u32 %v79, %v80
    %v82 = vshll.u32 2131351028, %v73
    %v83 = vshrl.u32 2102212464, %v74
    %v84 = vor.u32 %v82, %v83
    %v85 = vshll.u32 2102212464, %v73
    %v86 = vshrl.u32 920167782, %v74
    %v87 = vor.u32 %v85, %v86
    %v88 = vshll.u32 920167782, %v73
    %v89 = vshrl.u32 1326507024, %v74
    %v90 = vor.u32 %v88, %v89
    %vm91 = vcmp.lt.s32.totalorder %v72, 1
    %vm92 = vcmp.lt.s32.totalorder %v72, 2
    %vm93 = vcmp.lt.s32.totalorder %v72, 3
    %vm94 = vcmp.lt.s32.totalorder %v72, 4
    %v95 = vsel %vm91, %v75, %v78
    %v96 = vsel %vm94, %v84, 2102212464
    %v97 = vsel %vm93, %v81, %v96
    %v98 = vsel %vm92, %v95, %v97
    %v99 = vsel %vm91, %v78, %v81
    %v100 = vsel %vm94, %v87, 920167782
    %v101 = vsel %vm93, %v84, %v100
    %v102 = vsel %vm92, %v99, %v101
    %v103 = vsel %vm91, %v81, %v84
    %v104 = vsel %vm94, %v90, 1326507024
    %v105 = vsel %vm93, %v87, %v104
    %v106 = vsel %vm92, %v103, %v105
    %v107 = vshll.u32 %v67, 8
    %v108 = vmul.u32.u64.compose %v107, %v106
    %v109 = vextract.low.u32 %v108
    %v110 = vextract.high.u32 %v108
    %v111 = vmul.u32.u64.compose %v107, %v102
    %v112 = vextract.low.u32 %v111
    %v113 = vextract.high.u32 %v111
    %v114 = vmul.u32 %v107, %v98
    %v115 = vadd.s32 %v110, %v112
    %vm116 = vc.u32 %v110, %v112
    %v117 = vadd.s32 %v113, 1
    %v118 = vsel %vm116, %v117, %v113
    %v119 = vadd.s32 %v114, %v118
    %v120 = vadd.s32 %v119, 536870912
    %v121 = vshrl.u32 %v120, 30
    %v122 = vshll.u32 %v121, 30
    %v123 = vsub.s32 %v119, %v122
    %vm124 = vcmp.lt.s32.totalorder %v123, 0
    %v125 = vsub.s32 0, %v123
    %v126 = vsel %vm124, %v125, %v123
    %v127 = vclz %v126
    %v128 = vsub.s32 %v127, 2
    %vm129 = vcmp.gt.s32.totalorder 0, %v128
    %v130 = vsel %vm129, 0, %v128
    %v131 = vsub.s32 32, %v130
    %v132 = vshll.u32 %v123, %v130
    %v133 = vshrl.u32 %v115, %v131
    %v134 = vor.u32 %v132, %v133
    %v135 = vsub.s32 4294967266, %v130
    %v136 = vadd.s32 %v135, 127
    %v137 = vshll.u32 %v136, 23
    %v138 = vor.u32 4788187, %v137
    %v139 = vand.u32 2147483647, %v138
    %v141 = vcvt.s32.f32 %v134
    %v142 = vmul.f32 %v141, %v139
    %v143 = vxor.u32 %v142, 2147483648
    %v144 = vsel %vm61, %v143, %v142
    %v145 = vsub.s32 4, %v121
    %v146 = vsel %vm61, %v145, %v121
    %v147 = vsel %vm60, %v58, %v144
    %v148 = vsel %vm60, 0, %v146
    %v149 = vcosq.f32.pop %v147
    %v150 = vsinq.f32.pop %v147
    %vm151 = vweird.f32 %v58
    %v152 = vand.u32 %v148, 3
    %vm153 = vcmp.lt.s32.totalorder %v152, 2
    %vm154 = vcmp.eq.s32.totalorder %v152, 0
    %v155 = vxor.u32 %v150, 2147483648
    %v156 = vsel %vm154, %v149, %v155
    %vm157 = vcmp.eq.s32.totalorder %v152, 2
    %v158 = vxor.u32 %v149, 2147483648
    %v159 = vsel %vm157, %v158, %v150
    %v160 = vsel %vm153, %v156, %v159
    %v161 = vsel %vm151, nan, %v160
    %v162 = vpack.c.bf16 %v161, %v161
    %v163 = vand.u32 2147483647, %v58
    %vm164 = vcmp.le.f32.partialorder %v163, 0.7853982
    %vm165 = vcmp.lt.s32.totalorder %v58, 0
    %v166 = vand.u32 %v58, 2139095040
    %v167 = vshrl.u32 %v166, 23
    %v168 = vsub.s32 %v167, 127
    %v169 = vand.u32 2147483647, %v58
    %v170 = vand.u32 %v169, 8388607
    %v171 = vor.u32 %v170, 8388608
    %v172 = vsub.s32 0, %v171
    %v173 = vadd.s32 %v168, 1
    %vm174 = vcmp.gt.s32.totalorder %v173, 0
    %v175 = vsel %vm174, %v173, 0
    %v176 = vshrl.u32 %v175, 5
    %v177 = vand.u32 %v175, 31
    %v178 = vsub.s32 32, %v177
    %v179 = vshrl.u32 683565275, %v178
    %v180 = vshll.u32 683565275, %v177
    %v181 = vshrl.u32 2475754826, %v178
    %v182 = vor.u32 %v180, %v181
    %v183 = vshll.u32 2475754826, %v177
    %v184 = vshrl.u32 2131351028, %v178
    %v185 = vor.u32 %v183, %v184
    %v186 = vshll.u32 2131351028, %v177
    %v187 = vshrl.u32 2102212464, %v178
    %v188 = vor.u32 %v186, %v187
    %v189 = vshll.u32 2102212464, %v177
    %v190 = vshrl.u32 920167782, %v178
    %v191 = vor.u32 %v189, %v190
    %v192 = vshll.u32 920167782, %v177
    %v193 = vshrl.u32 1326507024, %v178
    %v194 = vor.u32 %v192, %v193
    %vm195 = vcmp.lt.s32.totalorder %v176, 1
    %vm196 = vcmp.lt.s32.totalorder %v176, 2
    %vm197 = vcmp.lt.s32.totalorder %v176, 3
    %vm198 = vcmp.lt.s32.totalorder %v176, 4
    %v199 = vsel %vm195, %v179, %v182
    %v200 = vsel %vm198, %v188, 2102212464
    %v201 = vsel %vm197, %v185, %v200
    %v202 = vsel %vm196, %v199, %v201
    %v203 = vsel %vm195, %v182, %v185
    %v204 = vsel %vm198, %v191, 920167782
    %v205 = vsel %vm197, %v188, %v204
    %v206 = vsel %vm196, %v203, %v205
    %v207 = vsel %vm195, %v185, %v188
    %v208 = vsel %vm198, %v194, 1326507024
    %v209 = vsel %vm197, %v191, %v208
    %v210 = vsel %vm196, %v207, %v209
    %v211 = vshll.u32 %v171, 8
    %v212 = vmul.u32.u64.compose %v211, %v210
    %v213 = vextract.low.u32 %v212
    %v214 = vextract.high.u32 %v212
    %v215 = vmul.u32.u64.compose %v211, %v206
    %v216 = vextract.low.u32 %v215
    %v217 = vextract.high.u32 %v215
    %v218 = vmul.u32 %v211, %v202
    %v219 = vadd.s32 %v214, %v216
    %vm220 = vc.u32 %v214, %v216
    %v221 = vadd.s32 %v217, 1
    %v222 = vsel %vm220, %v221, %v217
    %v223 = vadd.s32 %v218, %v222
    %v224 = vadd.s32 %v223, 536870912
    %v225 = vshrl.u32 %v224, 30
    %v226 = vshll.u32 %v225, 30
    %v227 = vsub.s32 %v223, %v226
    %vm228 = vcmp.lt.s32.totalorder %v227, 0
    %v229 = vsub.s32 0, %v227
    %v230 = vsel %vm228, %v229, %v227
    %v231 = vclz %v230
    %v232 = vsub.s32 %v231, 2
    %vm233 = vcmp.gt.s32.totalorder 0, %v232
    %v234 = vsel %vm233, 0, %v232
    %v235 = vsub.s32 32, %v234
    %v236 = vshll.u32 %v227, %v234
    %v237 = vshrl.u32 %v219, %v235
    %v238 = vor.u32 %v236, %v237
    %v239 = vsub.s32 4294967266, %v234
    %v240 = vadd.s32 %v239, 127
    %v241 = vshll.u32 %v240, 23
    %v242 = vor.u32 4788187, %v241
    %v243 = vand.u32 2147483647, %v242
    %v245 = vcvt.s32.f32 %v238
    %v246 = vmul.f32 %v245, %v243
    %v247 = vxor.u32 %v246, 2147483648
    %v248 = vsel %vm165, %v247, %v246
    %v249 = vsub.s32 4, %v225
    %v250 = vsel %vm165, %v249, %v225
    %v251 = vsel %vm164, %v58, %v248
    %v252 = vsel %vm164, 0, %v250
    %v253 = vcosq.f32.pop %v251
    %v254 = vsinq.f32.pop %v251
    %vm255 = vweird.f32 %v58
    %v256 = vadd.s32 %v252, 3
    %v257 = vand.u32 %v256, 3
    %vm258 = vcmp.lt.s32.totalorder %v257, 2
    %vm259 = vcmp.eq.s32.totalorder %v257, 0
    %v260 = vxor.u32 %v254, 2147483648
    %v261 = vsel %vm259, %v253, %v260
    %vm262 = vcmp.eq.s32.totalorder %v257, 2
    %v263 = vxor.u32 %v253, 2147483648
    %v264 = vsel %vm262, %v263, %v254
    %v265 = vsel %vm258, %v261, %v264
    %v266 = vsel %vm255, nan, %v265
    %v267 = vpack.c.bf16 %v266, %v266
    %v268 = vld [vmem:[%s5] sm:$0xf]
    %v269 = vld [vmem:[%s6] sm:$0xf]
    %vm270 = vcmask 64512
    %v272 = vsel %vm270, %v267, 0
    %vm274 = vcmask 1043456
    %v276 = vsel %vm274, %v269, 0
    %278 = vmatprep.subr.bf16.mxu0 0
    %279 = vmatpush1.bf16.msra.mxu0 0
    %280 = vmatprep.subr.bf16.mxu0 0
    %281 = vmatpush1.bf16.msra.mxu0 0
    %282 = vmatprep.subr.bf16.mxu0 0
    %283 = vmatpush1.bf16.msra.mxu0 0
    %284 = vmatprep.subr.bf16.mxu0 0
    %285 = vmatpush1.bf16.msra.mxu0 0
    %286 = vmatprep.subr.bf16.mxu0 0
    %287 = vmatpush1.bf16.msra.mxu0 0
    %288 = vmatprep.subr.bf16.mxu0 0
    %289 = vmatpush1.bf16.msra.mxu0 0
    %290 = vmatprep.subr.bf16.mxu0 0
    %291 = vmatpush1.bf16.msra.mxu0 0
    %292 = vmatprep.subr.bf16.mxu0 0
    %293 = vmatpush1.bf16.msra.mxu0 %v276
    %294 = vmatprep.subr.bf16.mxu0 0
    %295 = vmatpush2.bf16.msra.mxu0 0
    %296 = vmatprep.subr.bf16.mxu0 0
    %297 = vmatpush2.bf16.msra.mxu0 0
    %298 = vmatprep.subr.bf16.mxu0 0
    %299 = vmatpush2.bf16.msra.mxu0 0
    %300 = vmatprep.subr.bf16.mxu0 0
    %301 = vmatpush2.bf16.msra.mxu0 0
    %302 = vmatprep.subr.bf16.mxu0 0
    %303 = vmatpush2.bf16.msra.mxu0 0
    %304 = vmatprep.subr.bf16.mxu0 0
    %305 = vmatpush2.bf16.msra.mxu0 0
    %306 = vmatprep.subr.bf16.mxu0 0
    %307 = vmatpush2.bf16.msra.mxu0 0
    %308 = vmatprep.subr.bf16.mxu0 0
    %309 = vmatpush2.bf16.msra.mxu0 0
    %310 = vmatprep.mubr.bf16.mxu0 0
    %311 = vmatmul.mubr.bf16.gmra.mxu0 %v272
    %v312 = vpop.f32.mrf.mxu0
    %v313 = vadd.f32 0.0, %v312
    %v314 = vpop.f32.mrf.mxu0
    %v315 = vpop.f32.mrf.mxu0
    %v316 = vpop.f32.mrf.mxu0
    %317 = vdwg.mxu0
    %v319 = vsel %vm270, %v162, 0
    %v322 = vsel %vm274, %v268, 0
    %324 = vmatprep.subr.bf16.mxu0 0
    %325 = vmatpush1.bf16.msra.mxu0 0
    %326 = vmatprep.subr.bf16.mxu0 0
    %327 = vmatpush1.bf16.msra.mxu0 0
    %328 = vmatprep.subr.bf16.mxu0 0
    %329 = vmatpush1.bf16.msra.mxu0 0
    %330 = vmatprep.subr.bf16.mxu0 0
    %331 = vmatpush1.bf16.msra.mxu0 0
    %332 = vmatprep.subr.bf16.mxu0 0
    %333 = vmatpush1.bf16.msra.mxu0 0
    %334 = vmatprep.subr.bf16.mxu0 0
    %335 = vmatpush1.bf16.msra.mxu0 0
    %336 = vmatprep.subr.bf16.mxu0 0
    %337 = vmatpush1.bf16.msra.mxu0 0
    %338 = vmatprep.subr.bf16.mxu0 0
    %339 = vmatpush1.bf16.msra.mxu0 %v322
    %340 = vmatprep.subr.bf16.mxu0 0
    %341 = vmatpush2.bf16.msra.mxu0 0
    %342 = vmatprep.subr.bf16.mxu0 0
    %343 = vmatpush2.bf16.msra.mxu0 0
    %344 = vmatprep.subr.bf16.mxu0 0
    %345 = vmatpush2.bf16.msra.mxu0 0
    %346 = vmatprep.subr.bf16.mxu0 0
    %347 = vmatpush2.bf16.msra.mxu0 0
    %348 = vmatprep.subr.bf16.mxu0 0
    %349 = vmatpush2.bf16.msra.mxu0 0
    %350 = vmatprep.subr.bf16.mxu0 0
    %351 = vmatpush2.bf16.msra.mxu0 0
    %352 = vmatprep.subr.bf16.mxu0 0
    %353 = vmatpush2.bf16.msra.mxu0 0
    %354 = vmatprep.subr.bf16.mxu0 0
    %355 = vmatpush2.bf16.msra.mxu0 0
    %356 = vmatprep.mubr.bf16.mxu0 0
    %357 = vmatmul.mubr.bf16.gmra.mxu0 %v319
    %v358 = vpop.f32.mrf.mxu0
    %v359 = vadd.f32 %v313, %v358
    %v360 = vpop.f32.mrf.mxu0
    %v361 = vpop.f32.mrf.mxu0
    %v362 = vpop.f32.mrf.mxu0
    %363 = vdwg.mxu0
    %v364 = vld [vmem:[%s7] sm:$0x1]
    %v366 = vlaneseq
    %v367 = vshrl.u32 %v366, 7
    %v368 = vsub.s32 0, %v367
    %v369 = vrot.slane %v364, %v368
    %v371 = vadd.f32 %v359, %v369
    %v372 = vld [vmem:[%s3] sm:$0xff]
    %v373 = vld [vmem:[%s4] sm:$0x3]
    %v374 = vunpack.c.0.s8 %v373
    %v375 = vand.u32 %v374, 255
    %v376 = vcvt.s32.f32 %v375
    %v377 = vmul.f32 %v376, 2.0
    %v378 = vmul.f32 %v372, %v377
    %v379 = vpack.c.bf16 %v378, %v378
    %v380 = vld [vmem:[%s8] sm:$0xf]
    %v381 = vld [vmem:[%s8 + $0x4] sm:$0xf]
    %v382 = vld [vmem:[%s8 + $0x8] sm:$0xf]
    %v383 = vld [vmem:[%s8 + $0xc] sm:$0xf]
    %v384 = vld [vmem:[%s8 + $0x10] sm:$0xf]
    %v385 = vld [vmem:[%s8 + $0x14] sm:$0xf]
    %v386 = vld [vmem:[%s8 + $0x18] sm:$0xf]
    %v387 = vld [vmem:[%s8 + $0x1c] sm:$0xf]
    %v388 = vpack.c.bf16 %v371, %v371
    %v389 = vld [vmem:[%s9] sm:$0xf]
    %v390 = vld [vmem:[%s9 + $0x4] sm:$0xf]
    %v393 = vunpack.c.l.b16 %v389
    %v394 = vunpack.c.l.b16 %v390
    %v395 = vpack.c.b16 %v394, %v393
    %vm397 = vcmask 130048
    %v399 = vsel %vm397, %v388, 0
    %401 = vmatprep.subr.bf16.mxu0 0
    %402 = vmatpush1.bf16.msra.mxu0 0
    %403 = vmatprep.subr.bf16.mxu0 0
    %404 = vmatpush1.bf16.msra.mxu0 0
    %405 = vmatprep.subr.bf16.mxu0 0
    %406 = vmatpush1.bf16.msra.mxu0 0
    %407 = vmatprep.subr.bf16.mxu0 0
    %408 = vmatpush1.bf16.msra.mxu0 0
    %409 = vmatprep.subr.bf16.mxu0 0
    %410 = vmatpush1.bf16.msra.mxu0 0
    %411 = vmatprep.subr.bf16.mxu0 0
    %412 = vmatpush1.bf16.msra.mxu0 0
    %413 = vmatprep.subr.bf16.mxu0 0
    %414 = vmatpush1.bf16.msra.mxu0 0
    %415 = vmatprep.subr.bf16.mxu0 0
    %416 = vmatpush1.bf16.msra.mxu0 %v395
    %417 = vmatprep.subr.bf16.mxu0 0
    %418 = vmatpush2.bf16.msra.mxu0 0
    %419 = vmatprep.subr.bf16.mxu0 0
    %420 = vmatpush2.bf16.msra.mxu0 0
    %421 = vmatprep.subr.bf16.mxu0 0
    %422 = vmatpush2.bf16.msra.mxu0 0
    %423 = vmatprep.subr.bf16.mxu0 0
    %424 = vmatpush2.bf16.msra.mxu0 0
    %425 = vmatprep.subr.bf16.mxu0 0
    %426 = vmatpush2.bf16.msra.mxu0 0
    %427 = vmatprep.subr.bf16.mxu0 0
    %428 = vmatpush2.bf16.msra.mxu0 0
    %429 = vmatprep.subr.bf16.mxu0 0
    %430 = vmatpush2.bf16.msra.mxu0 0
    %431 = vmatprep.subr.bf16.mxu0 0
    %432 = vmatpush2.bf16.msra.mxu0 0
    %433 = vmatprep.mubr.bf16.mxu0 0
    %434 = vmatmul.mubr.bf16.gmra.mxu0 %v399
    %v435 = vpop.f32.mrf.mxu0
    %v436 = vadd.f32 0.0, %v435
    %v437 = vpop.f32.mrf.mxu0
    %v438 = vpop.f32.mrf.mxu0
    %v439 = vpop.f32.mrf.mxu0
    %440 = vdwg.mxu0
    %v449 = vunpack.c.l.b16 %v380
    %v450 = vunpack.c.l.b16 %v381
    %v451 = vunpack.c.l.b16 %v382
    %v452 = vunpack.c.l.b16 %v383
    %v453 = vunpack.c.l.b16 %v384
    %v454 = vunpack.c.l.b16 %v385
    %v455 = vunpack.c.l.b16 %v386
    %v456 = vunpack.c.l.b16 %v387
    %v457 = vpack.c.b16 %v450, %v449
    %v458 = vpack.c.b16 %v452, %v451
    %v459 = vpack.c.b16 %v454, %v453
    %v460 = vpack.c.b16 %v456, %v455
    %vm465 = vcmask 523264
    %v467 = vsel %vm465, %v379, 0
    %469 = vmatprep.subr.bf16.mxu0 0
    %470 = vmatpush1.bf16.msra.mxu0 0
    %471 = vmatprep.subr.bf16.mxu0 0
    %472 = vmatpush1.bf16.msra.mxu0 0
    %473 = vmatprep.subr.bf16.mxu0 0
    %474 = vmatpush1.bf16.msra.mxu0 0
    %475 = vmatprep.subr.bf16.mxu0 0
    %476 = vmatpush1.bf16.msra.mxu0 0
    %477 = vmatprep.subr.bf16.mxu0 0
    %478 = vmatpush1.bf16.msra.mxu0 %v460
    %479 = vmatprep.subr.bf16.mxu0 0
    %480 = vmatpush1.bf16.msra.mxu0 %v459
    %481 = vmatprep.subr.bf16.mxu0 0
    %482 = vmatpush1.bf16.msra.mxu0 %v458
    %483 = vmatprep.subr.bf16.mxu0 0
    %484 = vmatpush1.bf16.msra.mxu0 %v457
    %485 = vmatprep.subr.bf16.mxu0 0
    %486 = vmatpush2.bf16.msra.mxu0 0
    %487 = vmatprep.subr.bf16.mxu0 0
    %488 = vmatpush2.bf16.msra.mxu0 0
    %489 = vmatprep.subr.bf16.mxu0 0
    %490 = vmatpush2.bf16.msra.mxu0 0
    %491 = vmatprep.subr.bf16.mxu0 0
    %492 = vmatpush2.bf16.msra.mxu0 0
    %493 = vmatprep.subr.bf16.mxu0 0
    %494 = vmatpush2.bf16.msra.mxu0 0
    %495 = vmatprep.subr.bf16.mxu0 0
    %496 = vmatpush2.bf16.msra.mxu0 0
    %497 = vmatprep.subr.bf16.mxu0 0
    %498 = vmatpush2.bf16.msra.mxu0 0
    %499 = vmatprep.subr.bf16.mxu0 0
    %500 = vmatpush2.bf16.msra.mxu0 0
    %501 = vmatprep.mubr.bf16.mxu0 0
    %502 = vmatmul.mubr.bf16.gmra.mxu0 %v467
    %v503 = vpop.f32.mrf.mxu0
    %v504 = vadd.f32 %v436, %v503
    %v505 = vpop.f32.mrf.mxu0
    %v506 = vpop.f32.mrf.mxu0
    %v507 = vpop.f32.mrf.mxu0
    %508 = vdwg.mxu0
    %v509 = vld [vmem:[%s10] sm:$0x1]
    %v511 = vlaneseq
    %v512 = vshrl.u32 %v511, 7
    %v513 = vsub.s32 0, %v512
    %v514 = vrot.slane %v509, %v513
    %v516 = vadd.f32 %v504, %v514
    %v517 = vtanh.pop %v516
    %v518 = vpack.c.bf16 %v517, %v517
    %v519 = vld [vmem:[%s11] sm:$0xf]
    %v520 = vld [vmem:[%s11 + $0x4] sm:$0xf]
    %v521 = vld [vmem:[%s11 + $0x8] sm:$0xf]
    %v522 = vld [vmem:[%s11 + $0xc] sm:$0xf]
    %v523 = vld [vmem:[%s12] sm:$0x1]
    %v525 = vlaneseq
    %v526 = vshrl.u32 %v525, 7
    %v527 = vsub.s32 0, %v526
    %v528 = vrot.slane %v523, %v527
    %v534 = vunpack.c.l.b16 %v519
    %v535 = vunpack.c.l.b16 %v520
    %v536 = vunpack.c.l.b16 %v521
    %v537 = vunpack.c.l.b16 %v522
    %v538 = vpack.c.b16 %v535, %v534
    %v539 = vpack.c.b16 %v537, %v536
    %vm542 = vcmask 261120
    %v544 = vsel %vm542, %v518, 0
    %546 = vmatprep.subr.bf16.mxu0 0
    %547 = vmatpush1.bf16.msra.mxu0 0
    %548 = vmatprep.subr.bf16.mxu0 0
    %549 = vmatpush1.bf16.msra.mxu0 0
    %550 = vmatprep.subr.bf16.mxu0 0
    %551 = vmatpush1.bf16.msra.mxu0 0
    %552 = vmatprep.subr.bf16.mxu0 0
    %553 = vmatpush1.bf16.msra.mxu0 0
    %554 = vmatprep.subr.bf16.mxu0 0
    %555 = vmatpush1.bf16.msra.mxu0 0
    %556 = vmatprep.subr.bf16.mxu0 0
    %557 = vmatpush1.bf16.msra.mxu0 0
    %558 = vmatprep.subr.bf16.mxu0 0
    %559 = vmatpush1.bf16.msra.mxu0 %v539
    %560 = vmatprep.subr.bf16.mxu0 0
    %561 = vmatpush1.bf16.msra.mxu0 %v538
    %562 = vmatprep.subr.bf16.mxu0 0
    %563 = vmatpush2.bf16.msra.mxu0 0
    %564 = vmatprep.subr.bf16.mxu0 0
    %565 = vmatpush2.bf16.msra.mxu0 0
    %566 = vmatprep.subr.bf16.mxu0 0
    %567 = vmatpush2.bf16.msra.mxu0 0
    %568 = vmatprep.subr.bf16.mxu0 0
    %569 = vmatpush2.bf16.msra.mxu0 0
    %570 = vmatprep.subr.bf16.mxu0 0
    %571 = vmatpush2.bf16.msra.mxu0 0
    %572 = vmatprep.subr.bf16.mxu0 0
    %573 = vmatpush2.bf16.msra.mxu0 0
    %574 = vmatprep.subr.bf16.mxu0 0
    %575 = vmatpush2.bf16.msra.mxu0 0
    %576 = vmatprep.subr.bf16.mxu0 0
    %577 = vmatpush2.bf16.msra.mxu0 0
    %578 = vmatprep.mubr.bf16.mxu0 0
    %579 = vmatmul.mubr.bf16.gmra.mxu0 %v544
    %v580 = vpop.f32.mrf.mxu0
    %v581 = vadd.f32 %v528, %v580
    %v582 = vpop.f32.mrf.mxu0
    %v583 = vpop.f32.mrf.mxu0
    %v584 = vpop.f32.mrf.mxu0
    %585 = vdwg.mxu0
    %586 = vst.msk [vmem:[#allocation4] sm:$0xff] %vm465, %v581
    // Predicated region
    $region50: #{tpu_custom_call.1} parent=1 // pred_check
      _
    $region51: #{tpu_custom_call.1} parent=1 // pred_check_branch
      %588 = sbr.rel (0) target = $region53
    $region52: #{tpu_custom_call.1} parent=1 // pred_region
      %s590 = ssub.s32 128, 128
      %591 = vsyncadd [#allocation5], %s590
      %s593 = sshll.u32 [#allocation4], 4
      %s594 = int_to_ptr.vmem [resolvable:$true] %s593
      %596 = dma.vmem_to_hbm [thread:$0]  %s594, 128, %s13, [#allocation5]
    $region53: #{tpu_custom_call.1} parent=1 // pred_fallthru
      _
    // Predicated region
    $region54: #{tpu_custom_call.1} parent=1 // pred_check
      _
    $region55: #{tpu_custom_call.1} parent=1 // pred_check_branch
      %598 = sbr.rel (0) target = $region57
    $region56: #{tpu_custom_call.1} parent=1 // pred_region
      %599 = dma.done [#allocation5], 128
    $region57: #{tpu_custom_call.1} parent=1 // pred_fallthru
      _
    %600 = vsyncpa [#allocation5], 1

</llo_original>
